<compile_context>
chip_gen: v6e
topology: v6e:2x2x1
jax: 0.10.0
libtpu: 0.0.40
codegen_flags: <defaults>
</compile_context>

<pallas_src>
import math
import functools

import jax
import jax.numpy as jnp
from jax.experimental import pallas as pl
from jax.experimental.pallas import tpu as pltpu

NEG_INF = -1e9          # numerically safe masking value (avoids NaN softmax rows)
LN_EPS = 1e-5           # PyTorch LayerNorm default eps


def _full_spec(arr):
    """BlockSpec covering the whole array, constant across the batch grid axis."""
    nd = arr.ndim
    return pl.BlockSpec(arr.shape, lambda b: (0,) * nd)


# ------------------------- Pallas kernels -------------------------

def _embed_pe_kernel(e_ref, pe_ref, o_ref, *, scale):
    o_ref[...] = e_ref[...] * scale + pe_ref[...]


def embed_scale_add_pe(emb, pe, scale):
    """emb: (B, T, H) f32, pe: (1, T, H) f32 -> emb * sqrt(H) + pe."""
    B, T, H = emb.shape
    return pl.pallas_call(
        functools.partial(_embed_pe_kernel, scale=scale),
        out_shape=jax.ShapeDtypeStruct((B, T, H), jnp.float32),
        grid=(B,),
        in_specs=[pl.BlockSpec((1, T, H), lambda b: (b, 0, 0)),
                  pl.BlockSpec((1, T, H), lambda b: (0, 0, 0))],
        out_specs=pl.BlockSpec((1, T, H), lambda b: (b, 0, 0)),
        compiler_params=pltpu.CompilerParams(dimension_semantics=("parallel",)),
    )(emb, pe)


def _attn_block_kernel(x_ref, kv_ref, m_ref, wq_ref, bq_ref, wkv_ref, bkv_ref,
                       wo_ref, bo_ref, g_ref, beta_ref, o_ref, *, n_heads, scale):
    """Fused MHA sub-layer for ONE batch element (grid axis = batch).

    x_ref  : (1, Tq, H) f32      query source (decoder state)
    kv_ref : (1, Tk, H) f32      key/value source (decoder state or memory)
    m_ref  : (1, Tq|1, Tk) f32   additive attention bias (causal + padding)
    wq_ref : (H, H)  bf16        bq_ref : (1, H)  f32
    wkv_ref: (H, 2H) bf16        bkv_ref: (1, 2H) f32
    wo_ref : (n_heads, Dh, H) bf16 (output projection split per head)
    bo_ref : (1, H) f32
    g_ref / beta_ref : (1, H) f32  LayerNorm affine
    o_ref  : (1, Tq, H) f32 = LayerNorm(x + MHA(x, kv))
    """
    x = x_ref[0]                         # (Tq, H) f32
    kv_src = kv_ref[0]                   # (Tk, H) f32
    mask = m_ref[0]                      # (Tq or 1, Tk) f32 additive bias
    Tq, H = x.shape
    Dh = H // n_heads

    # Q and fused-KV projections: bf16 MXU operands, f32 accumulation.
    q = jnp.dot(x.astype(jnp.bfloat16), wq_ref[...],
                preferred_element_type=jnp.float32) + bq_ref[...]           # (Tq, H)
    kv = jnp.dot(kv_src.astype(jnp.bfloat16), wkv_ref[...],
                 preferred_element_type=jnp.float32) + bkv_ref[...]         # (Tk, 2H)
    qb = q.astype(jnp.bfloat16)
    kb = kv[:, :H].astype(jnp.bfloat16)
    vb = kv[:, H:].astype(jnp.bfloat16)

    # Per-head attention + output projection, accumulated lane-dense (Tq, H).
    proj = jnp.zeros((Tq, H), jnp.float32)
    for h in range(n_heads):                                   # static unroll
        sl = slice(h * Dh, (h + 1) * Dh)
        s = jnp.einsum("qd,kd->qk", qb[:, sl], kb[:, sl],
                       preferred_element_type=jnp.float32) * scale + mask
        s = s - jnp.max(s, axis=-1, keepdims=True)             # f32 softmax stats
        p = jnp.exp(s)
        p = p * pl.reciprocal(jnp.sum(p, axis=-1, keepdims=True), approx=True)
        oh = jnp.dot(p.astype(jnp.bfloat16), vb[:, sl],
                     preferred_element_type=jnp.float32)                    # (Tq, Dh)
        proj = proj + jnp.dot(oh.astype(jnp.bfloat16), wo_ref[h],
                              preferred_element_type=jnp.float32)           # (Tq, H)
    proj = proj + bo_ref[...]

    # Residual + LayerNorm epilogue (f32 statistics), fused with the matmuls.
    y = x + proj
    mu = jnp.mean(y, axis=-1, keepdims=True)
    var = jnp.mean((y - mu) ** 2, axis=-1, keepdims=True)
    o_ref[0] = (y - mu) * jax.lax.rsqrt(var + LN_EPS) * g_ref[...] + beta_ref[...]


def attn_block(x, kv, mask, p, gamma, beta, n_heads):
    """LayerNorm(x + MultiheadAttention(x, kv, kv)) -- one fused pallas_call."""
    B, Tq, H = x.shape
    Tk = kv.shape[1]
    Tm = mask.shape[1]
    scale = 1.0 / math.sqrt(H // n_heads)
    return pl.pallas_call(
        functools.partial(_attn_block_kernel, n_heads=n_heads, scale=scale),
        out_shape=jax.ShapeDtypeStruct((B, Tq, H), jnp.float32),
        grid=(B,),
        in_specs=[
            pl.BlockSpec((1, Tq, H), lambda b: (b, 0, 0)),      # x (queries)
            pl.BlockSpec((1, Tk, H), lambda b: (b, 0, 0)),      # kv source
            pl.BlockSpec((1, Tm, Tk), lambda b: (b, 0, 0)),     # additive mask
            _full_spec(p["wq"]), _full_spec(p["bq"]),
            _full_spec(p["wkv"]), _full_spec(p["bkv"]),
            _full_spec(p["wo"]), _full_spec(p["bo"]),
            _full_spec(gamma), _full_spec(beta),
        ],
        out_specs=pl.BlockSpec((1, Tq, H), lambda b: (b, 0, 0)),
        compiler_params=pltpu.CompilerParams(dimension_semantics=("parallel",)),
    )(x, kv, mask, p["wq"], p["bq"], p["wkv"], p["bkv"], p["wo"], p["bo"],
      gamma, beta)


def _ffn_block_kernel(x_ref, w1_ref, b1_ref, w2_ref, b2_ref, g_ref, beta_ref, o_ref):
    """Fused FFN sub-layer: LayerNorm(x + W2 @ relu(W1 @ x + b1) + b2)."""
    x = x_ref[0]                                               # (T, H) f32
    h = jnp.dot(x.astype(jnp.bfloat16), w1_ref[...],
                preferred_element_type=jnp.float32) + b1_ref[...]
    h = jnp.maximum(h, 0.0)                                    # ReLU
    ff = jnp.dot(h.astype(jnp.bfloat16), w2_ref[...],
                 preferred_element_type=jnp.float32) + b2_ref[...]
    y = x + ff
    mu = jnp.mean(y, axis=-1, keepdims=True)
    var = jnp.mean((y - mu) ** 2, axis=-1, keepdims=True)
    o_ref[0] = (y - mu) * jax.lax.rsqrt(var + LN_EPS) * g_ref[...] + beta_ref[...]


def ffn_block(x, p):
    B, T, H = x.shape
    return pl.pallas_call(
        _ffn_block_kernel,
        out_shape=jax.ShapeDtypeStruct((B, T, H), jnp.float32),
        grid=(B,),
        in_specs=[
            pl.BlockSpec((1, T, H), lambda b: (b, 0, 0)),
            _full_spec(p["w1"]), _full_spec(p["b1"]),
            _full_spec(p["w2"]), _full_spec(p["b2"]),
            _full_spec(p["ln3_g"]), _full_spec(p["ln3_b"]),
        ],
        out_specs=pl.BlockSpec((1, T, H), lambda b: (b, 0, 0)),
        compiler_params=pltpu.CompilerParams(dimension_semantics=("parallel",)),
    )(x, p["w1"], p["b1"], p["w2"], p["b2"], p["ln3_g"], p["ln3_b"])


# ------------------------- model glue -------------------------

def decoder_layer(x, memory, self_mask, cross_mask, p, n_heads):
    """nn.TransformerDecoderLayer forward (norm_first=False, relu, eval mode)."""
    x = attn_block(x, x, self_mask, p["self_attn"], p["ln1_g"], p["ln1_b"], n_heads)
    x = attn_block(x, memory, cross_mask, p["cross_attn"], p["ln2_g"], p["ln2_b"],
                   n_heads)
    x = ffn_block(x, p)
    return x


def init_decoder_params(key, num_emb, hid_dim, n_layers, n_heads, ff_dim, max_length):
    keys = jax.random.split(key, 1 + n_layers)
    params = {}
    params["tok_embedding"] = (
        jax.random.normal(keys[0], (num_emb, hid_dim), jnp.float32) * 0.02
    )
    # sinusoidal positional-encoding buffer (PositionalEncoding.pe, squeezed)
    position = jnp.arange(max_length, dtype=jnp.float32)[:, None]
    div_term = jnp.exp(
        jnp.arange(0, hid_dim, 2, dtype=jnp.float32) * (-math.log(10000.0) / hid_dim)
    )
    pe = jnp.zeros((max_length, hid_dim), jnp.float32)
    pe = pe.at[:, 0::2].set(jnp.sin(position * div_term))
    pe = pe.at[:, 1::2].set(jnp.cos(position * div_term))
    params["pe"] = pe

    dh = hid_dim // n_heads

    def w(k, shape):
        return jax.random.normal(k, shape, jnp.float32) * 0.02

    def attn_params(kset):
        wq = w(kset[0], (hid_dim, hid_dim))
        wk = w(kset[1], (hid_dim, hid_dim))
        wv = w(kset[2], (hid_dim, hid_dim))
        wo = w(kset[3], (hid_dim, hid_dim))
        return {
            # bf16 MXU weights; fused K/V projection; per-head-split out-proj.
            "wq": wq.astype(jnp.bfloat16),
            "bq": jnp.zeros((1, hid_dim), jnp.float32),
            "wkv": jnp.concatenate([wk, wv], axis=1).astype(jnp.bfloat16),
            "bkv": jnp.zeros((1, 2 * hid_dim), jnp.float32),
            "wo": wo.reshape(n_heads, dh, hid_dim).astype(jnp.bfloat16),
            "bo": jnp.zeros((1, hid_dim), jnp.float32),
        }

    layers = []
    for l in range(n_layers):
        lk = jax.random.split(keys[1 + l], 10)
        layers.append({
            "self_attn": attn_params(lk[0:4]),
            "cross_attn": attn_params(lk[4:8]),
            "w1": w(lk[8], (hid_dim, ff_dim)).astype(jnp.bfloat16),
            "b1": jnp.zeros((1, ff_dim), jnp.float32),
            "w2": w(lk[9], (ff_dim, hid_dim)).astype(jnp.bfloat16),
            "b2": jnp.zeros((1, hid_dim), jnp.float32),
            "ln1_g": jnp.ones((1, hid_dim), jnp.float32),
            "ln1_b": jnp.zeros((1, hid_dim), jnp.float32),
            "ln2_g": jnp.ones((1, hid_dim), jnp.float32),
            "ln2_b": jnp.zeros((1, hid_dim), jnp.float32),
            "ln3_g": jnp.ones((1, hid_dim), jnp.float32),
            "ln3_b": jnp.zeros((1, hid_dim), jnp.float32),
        })
    params["layers"] = layers
    return params


def decoder_forward(params, tgt_tokens, memory, src_pad_mask, tgt_mask,
                    tgt_key_padding_mask, n_heads):
    B, T = tgt_tokens.shape
    H = params["tok_embedding"].shape[1]

    # Token embedding gather (glue) then scale by sqrt(H) + positional encoding
    # (BLANCE_EMBEDDING_VECTOR=True -> sqrt(hid_dim)); elementwise part in Pallas.
    # TODO(synk): the gather stays in XLA (jnp.take); a scalar-prefetch row-gather
    # Pallas kernel could fold it into the same call.
    emb = jnp.take(params["tok_embedding"], tgt_tokens, axis=0)          # (B, T, H)
    pe = params["pe"][:T][None, :, :]                                    # (1, T, H)
    x = embed_scale_add_pe(emb, pe, math.sqrt(float(H)))
    # TODO(synk): dropout layers are identity here (eval-mode semantics).

    # Compact additive attention biases (no n_heads broadcast; PyTorch semantics:
    # float tgt_mask added; bool key_padding_mask True -> masked out).
    tgt_kpm_add = jnp.where(tgt_key_padding_mask, NEG_INF, 0.0)          # (B, T)
    self_mask = (tgt_mask.astype(jnp.float32)[None, :, :]
                 + tgt_kpm_add[:, None, :]).astype(jnp.float32)          # (B, T, T)
    cross_mask = jnp.where(src_pad_mask, NEG_INF,
                           0.0).astype(jnp.float32)[:, None, :]          # (B, 1, S)

    # TODO(synk): cross-pallas_call weight prefetch for the layer loop (P10) is
    # not implemented; layer weights are tiny here and hide behind compute.
    for p in params["layers"]:
        x = decoder_layer(x, memory, self_mask, cross_mask, p, n_heads)
    return x


if __name__ == "__main__":
    B, T, S = 2, 8, 8
    num_emb, hid_dim, n_layers, n_heads, ff_dim_small = 50, 32, 2, 4, 64
    max_length = 100

    key = jax.random.PRNGKey(0)
    kp, kt, km = jax.random.split(key, 3)

    params = init_decoder_params(kp, num_emb, hid_dim, n_layers, n_heads,
                                 ff_dim_small, max_length)

    tgt = jax.random.randint(kt, (B, T), 0, num_emb)                  # token ids
    memory = jax.random.normal(km, (B, S, hid_dim), jnp.float32)      # encoder output

    # causal float mask (like nn.Transformer.generate_square_subsequent_mask)
    tgt_mask = jnp.where(
        jnp.arange(T)[None, :] > jnp.arange(T)[:, None], NEG_INF, 0.0
    ).astype(jnp.float32)
    # bool padding masks: True = padded position
    src_pad_mask = jnp.zeros((B, S), dtype=bool).at[:, S - 1].set(True)
    tgt_key_padding_mask = jnp.zeros((B, T), dtype=bool).at[1, T - 1].set(True)

    out = decoder_forward(params, tgt, memory, src_pad_mask, tgt_mask,
                          tgt_key_padding_mask, n_heads)
    out = jax.block_until_ready(out)
    assert out.shape == (B, T, hid_dim)
    assert bool(jnp.all(jnp.isfinite(out)))
    print("KERNEL_OK")
</pallas_src>

<mosaic_0001>
module attributes {stable_mosaic.version = 11 : i64} {
  func.func @_embed_pe_kernel(%arg0: i32, %arg1: memref<1x8x32xf32, #tpu.memory_space<vmem>>, %arg2: memref<1x8x32xf32, #tpu.memory_space<vmem>>, %arg3: memref<1x8x32xf32, #tpu.memory_space<vmem>>) attributes {dimension_semantics = [#tpu.dimension_semantics<parallel>], iteration_bounds = array<i64: 2>, scalar_prefetch = 0 : i64, scratch_operands = 0 : i64, tpu.core_type = #tpu.core_type<tc>, window_params = [{transform_indices = @transform_0, window_bounds = array<i64: 1, 8, 32>}, {pipeline_mode = #tpu.pipeline_mode<synchronous>, transform_indices = @transform_1, window_bounds = array<i64: 1, 8, 32>}, {transform_indices = @transform_2, window_bounds = array<i64: 1, 8, 32>}]} {
    %c0 = arith.constant 0 : index
    %c0_0 = arith.constant 0 : index
    %c0_1 = arith.constant 0 : index
    %0 = vector.load %arg1[%c0, %c0_0, %c0_1] : memref<1x8x32xf32, #tpu.memory_space<vmem>>, vector<1x8x32xf32>
    %cst = arith.constant 5.65685415 : f32
    %1 = vector.broadcast %cst : f32 to vector<1x8x32xf32>
    %2 = arith.mulf %0, %1 : vector<1x8x32xf32>
    %c0_2 = arith.constant 0 : index
    %c0_3 = arith.constant 0 : index
    %c0_4 = arith.constant 0 : index
    %3 = vector.load %arg2[%c0_2, %c0_3, %c0_4] : memref<1x8x32xf32, #tpu.memory_space<vmem>>, vector<1x8x32xf32>
    %4 = arith.addf %2, %3 : vector<1x8x32xf32>
    %c0_5 = arith.constant 0 : index
    %c0_6 = arith.constant 0 : index
    %c0_7 = arith.constant 0 : index
    %5 = vector.load %arg3[%c0_5, %c0_6, %c0_7] : memref<1x8x32xf32, #tpu.memory_space<vmem>>, vector<1x8x32xf32>
    tpu.vector_store %arg3[%c0_5, %c0_6, %c0_7], %4 {strides = array<i32>} : memref<1x8x32xf32, #tpu.memory_space<vmem>>, vector<1x8x32xf32>,
    return
  }
  func.func @transform_0(%arg0: i32) -> (i32, i32, i32) {
    %c0_i32 = arith.constant 0 : i32
    %c0_i32_0 = arith.constant 0 : i32
    %c0_i32_1 = arith.constant 0 : i32
    return %arg0, %c0_i32, %c0_i32_0 : i32, i32, i32
  }
  func.func @transform_1(%arg0: i32) -> (i32, i32, i32) {
    %c0_i32 = arith.constant 0 : i32
    %c0_i32_0 = arith.constant 0 : i32
    %c0_i32_1 = arith.constant 0 : i32
    %c0_i32_2 = arith.constant 0 : i32
    return %c0_i32, %c0_i32_0, %c0_i32_1 : i32, i32, i32
  }
  func.func @transform_2(%arg0: i32) -> (i32, i32, i32) {
    %c0_i32 = arith.constant 0 : i32
    %c0_i32_0 = arith.constant 0 : i32
    %c0_i32_1 = arith.constant 0 : i32
    return %arg0, %c0_i32, %c0_i32_0 : i32, i32, i32
  }
}

</mosaic_0001>

<llo_original>
// kernel: tpu_custom_call.1
$region0: #{tpu_custom_call.1}
  #allocation0 [shape = 'u32[]', space=smem, size = 0x4, offset = 0x4, fixed_abs, tag = 'smem constant byte address 0x4 - core index']
  #allocation1 [shape = 'u32[144,128]{1,0:T(1,128)}', space=vmem, size = 0x12000, scoped, tag = 'internal scratch']
  %s0 = inlined_call_operand.hbm [shape: f32[2,8,32], index: 0, kind: input, shape index: {}]
  %s1 = inlined_call_operand.hbm [shape: f32[1,8,32], index: 1, kind: input, shape index: {}]
  %s2 = inlined_call_operand.hbm [shape: f32[2,8,32], index: 2, kind: output, shape index: {}]
  %s3 = sld [smem:[#allocation0]]
  $region49: #{tpu_custom_call.1} parent=0
    _
  %s5 = ssub.s32 1, %s3
  %s6 = scalar_select 0, %s5, %s3
  $region1: #{tpu_custom_call.1} parent=0
    #allocation2 [shape = 'u8[8192]{0}', space=vmem, size = 0x2000, scoped, tag = 'input window, operand 0']
    #allocation3 [shape = 's32[2]{0}', space=sflag, size = 0x8, scoped, tag = 'scoped memory for tpu_custom_call.1']
    #allocation4 [shape = 's32[2]{0}', space=sflag, size = 0x8, scoped, tag = 'scoped memory for tpu_custom_call.1']
    #allocation5 [shape = 'u8[4096]{0}', space=vmem, size = 0x1000, scoped, tag = 'input window, operand 1, single buffered']
    #allocation6 [shape = 's32[1]{0}', space=sflag, size = 0x4, scoped, tag = 'scoped memory for tpu_custom_call.1']
    #allocation7 [shape = 'u8[8192]{0}', space=vmem, size = 0x2000, scoped, tag = 'output window, operand 0']
    %7 = vsyncpa [#allocation3], 0
    %s8 = scalar_lea.sflag [#allocation3], 1
    %9 = vsyncpa %s8, 0
    %10 = vsyncpa [#allocation6], 0
    %11 = vsyncpa [#allocation4], 0
    %s12 = scalar_lea.sflag [#allocation4], 1
    %13 = vsyncpa %s12, 0
    loop: start=0, step=1, limit=4
    $region2: #{tpu_custom_call.1} parent=1 // loop_pre_header
      _
    $region3: #{tpu_custom_call.1} parent=1 // loop_header
      %s15 = sphi 0, %s19
      %p16 = scmp.ge.s32.totalorder %s15, 4
      %s25 = sphi 0, %s27
      %s28 = sphi 0, %s25
      %s29 = sphi 0, %s28
      %s45 = sphi 0, %s29
      %s49 = sphi 0, %s49
      %s51 = sphi 0, %s49
      %s52 = sphi 0, %s51
      %s66 = sphi 0, %s52
      %s72 = sphi 0, %s74
      %s75 = sphi 0, %s72
      %s76 = sphi 0, %s75
      %s92 = sphi 0, %s76
    $region4: #{tpu_custom_call.1} parent=1 // loop_header_branch
      %18 = sbr.rel (%p16) target = $region8
    $region5: #{tpu_custom_call.1} parent=1 // loop_body
      %s20 = ssub.s32 %s15, 1
      %s21 = ssub.s32 %s15, 2
      %s22 = sadd.s32 %s15, 1
      %s23 = ssub.s32 %s15, %s22
      %p24 = scmp.eq.s32.totalorder %s23, 0
      %s26 = sadd.s32 %s25, 1
      %s27 = scalar_select %p24, %s25, %s26
      %p30 = pneg %p24
      %p31 = scmp.eq.s32.totalorder %s15, 1
      %p32 = por %p30, %p31
      %p33 = scmp.ne.s32.totalorder %s25, %s28
      %p34 = scmp.eq.s32.totalorder %s15, 0
      %p35 = por %p33, %p34
      %p36 = scmp.ne.s32.totalorder %s25, %s28
      %p37 = scmp.eq.s32.totalorder %s20, 1
      %p38 = por %p36, %p37
      %p39 = scmp.ne.s32.totalorder %s28, %s29
      %p40 = scmp.eq.s32.totalorder %s20, 0
      %p41 = por %p39, %p40
      %p42 = scmp.ne.s32.totalorder %s28, %s29
      %p43 = scmp.eq.s32.totalorder %s21, 1
      %p44 = por %p42, %p43
      %p46 = scmp.ne.s32.totalorder %s29, %s45
      %p47 = scmp.eq.s32.totalorder %s21, 0
      %p48 = por %p46, %p47
      %s50 = sadd.s32 %s49, 1
      %p53 = scmp.eq.s32.totalorder %s15, 1
      %p54 = scmp.ne.s32.totalorder %s49, %s51
      %p55 = scmp.eq.s32.totalorder %s15, 0
      %p56 = por %p54, %p55
      %p57 = scmp.ne.s32.totalorder %s49, %s51
      %p58 = scmp.eq.s32.totalorder %s20, 1
      %p59 = por %p57, %p58
      %p60 = scmp.ne.s32.totalorder %s51, %s52
      %p61 = scmp.eq.s32.totalorder %s20, 0
      %p62 = por %p60, %p61
      %p63 = scmp.ne.s32.totalorder %s51, %s52
      %p64 = scmp.eq.s32.totalorder %s21, 1
      %p65 = por %p63, %p64
      %p67 = scmp.ne.s32.totalorder %s52, %s66
      %p68 = scmp.eq.s32.totalorder %s21, 0
      %p69 = por %p67, %p68
      %s70 = ssub.s32 %s15, %s22
      %p71 = scmp.eq.s32.totalorder %s70, 0
      %s73 = sadd.s32 %s72, 1
      %s74 = scalar_select %p71, %s72, %s73
      %p77 = pneg %p71
      %p78 = scmp.eq.s32.totalorder %s15, 1
      %p79 = por %p77, %p78
      %p80 = scmp.ne.s32.totalorder %s72, %s75
      %p81 = scmp.eq.s32.totalorder %s15, 0
      %p82 = por %p80, %p81
      %p83 = scmp.ne.s32.totalorder %s72, %s75
      %p84 = scmp.eq.s32.totalorder %s20, 1
      %p85 = por %p83, %p84
      %p86 = scmp.ne.s32.totalorder %s75, %s76
      %p87 = scmp.eq.s32.totalorder %s20, 0
      %p88 = por %p86, %p87
      %p89 = scmp.ne.s32.totalorder %s75, %s76
      %p90 = scmp.eq.s32.totalorder %s21, 1
      %p91 = por %p89, %p90
      %p93 = scmp.ne.s32.totalorder %s76, %s92
      %p94 = scmp.eq.s32.totalorder %s21, 0
      %p95 = por %p93, %p94
      %p96 = scmp.le.s32.totalorder 1, %s15
      %p97 = scmp.lt.s32.totalorder %s15, 3
      %p98 = pnand %p96, %p97
      %p99 = pneg %p98
      // Predicated region
      $region9: #{tpu_custom_call.1} parent=5 // pred_check
        _
      $region10: #{tpu_custom_call.1} parent=5 // pred_check_branch
        %101 = sbr.rel (%p98) target = $region12
      $region11: #{tpu_custom_call.1} parent=5 // pred_region
        %s102 = ssub.s32 %s15, 1
        // Predicated region
        $region13: #{tpu_custom_call.1} parent=11 // pred_check
          %p103 = pneg %p62
        $region14: #{tpu_custom_call.1} parent=11 // pred_check_branch
          %105 = sbr.rel (%p103) target = $region16
        $region15: #{tpu_custom_call.1} parent=11 // pred_region
          %s107 = ssub.s32 128, 128
          %108 = vsyncadd [#allocation6], %s107
          %s110 = sshll.u32 [#allocation5], 4
          %s111 = int_to_ptr.vmem [resolvable:$true] %s110
          %113 = dma.hbm_to_vmem [thread:$0]  %s1, 128, %s111, [#allocation6]
        $region16: #{tpu_custom_call.1} parent=11 // pred_fallthru
          _
      $region12: #{tpu_custom_call.1} parent=5 // pred_fallthru
        _
      %p114 = scmp.lt.s32.totalorder %s15, 2
      // Predicated region
      $region17: #{tpu_custom_call.1} parent=5 // pred_check
        %p115 = pneg %p114
      $region18: #{tpu_custom_call.1} parent=5 // pred_check_branch
        %117 = sbr.rel (%p115) target = $region20
      $region19: #{tpu_custom_call.1} parent=5 // pred_region
        // Predicated region
        $region21: #{tpu_custom_call.1} parent=19 // pred_check
          %p118 = pneg %p35
        $region22: #{tpu_custom_call.1} parent=19 // pred_check_branch
          %120 = sbr.rel (%p118) target = $region24
        $region23: #{tpu_custom_call.1} parent=19 // pred_region
          %s121 = sand.u32 %s25, 1
          %s122 = scalar_lea.sflag [#allocation3], %s121
          %s123 = sand.u32 %s25, 1
          %s124 = smul.addr %s123, 8
          %s125 = scalar_lea.vmem [#allocation2], %s124
          %s127 = ssub.s32 128, 128
          %128 = vsyncadd %s122, %s127
          %s129 = smul.addr %s15, 128
          %s130 = scalar_lea.hbm %s0, %s129
          %s132 = sshll.u32 %s125, 4
          %s133 = int_to_ptr.vmem [resolvable:$true] %s132
          %135 = dma.hbm_to_vmem [thread:$0]  %s130, 128, %s133, %s122
        $region24: #{tpu_custom_call.1} parent=19 // pred_fallthru
          _
      $region20: #{tpu_custom_call.1} parent=5 // pred_fallthru
        _
      %p136 = scmp.le.s32.totalorder 1, %s15
      %p137 = scmp.lt.s32.totalorder %s15, 3
      %p138 = pnand %p136, %p137
      %p139 = pneg %p138
      // Predicated region
      $region25: #{tpu_custom_call.1} parent=5 // pred_check
        _
      $region26: #{tpu_custom_call.1} parent=5 // pred_check_branch
        %141 = sbr.rel (%p138) target = $region28
      $region27: #{tpu_custom_call.1} parent=5 // pred_region
        %s142 = ssub.s32 %s15, 1
        %s143 = sand.u32 %s28, 1
        %s144 = scalar_lea.sflag [#allocation3], %s143
        %s145 = sand.u32 %s28, 1
        %s146 = smul.addr %s145, 8
        %s147 = scalar_lea.vmem [#allocation2], %s146
        // Predicated region
        $region29: #{tpu_custom_call.1} parent=27 // pred_check
          %p148 = pneg %p41
        $region30: #{tpu_custom_call.1} parent=27 // pred_check_branch
          %150 = sbr.rel (%p148) target = $region32
        $region31: #{tpu_custom_call.1} parent=27 // pred_region
          %151 = dma.done %s144, 128
        $region32: #{tpu_custom_call.1} parent=27 // pred_fallthru
          _
        // Predicated region
        $region33: #{tpu_custom_call.1} parent=27 // pred_check
          %p152 = pneg %p62
        $region34: #{tpu_custom_call.1} parent=27 // pred_check_branch
          %154 = sbr.rel (%p152) target = $region36
        $region35: #{tpu_custom_call.1} parent=27 // pred_region
          %155 = dma.done [#allocation6], 128
        $region36: #{tpu_custom_call.1} parent=27 // pred_fallthru
          _
        %s156 = sand.u32 %s28, 1
        %s157 = scalar_lea.sflag [#allocation3], %s156
        %s158 = sand.u32 %s28, 1
        %s159 = smul.addr %s158, 8
        %s160 = scalar_lea.vmem [#allocation2], %s159
        %p161 = pneg %p41
        %p162 = pneg %p38
        %p163 = pneg %p62
        %p164 = pneg %p59
        %p165 = pneg %p88
        %p166 = pneg %p85
        %s167 = sand.u32 %s75, 1
        %s168 = scalar_lea.sflag [#allocation4], %s167
        %s169 = sand.u32 %s75, 1
        %s170 = smul.addr %s169, 8
        %s171 = scalar_lea.vmem [#allocation7], %s170
        %v172 = vld [vmem:[%s147] sm:$0xff]
        %v173 = vmul.f32 %v172, 5.656854
        %v174 = vld [vmem:[#allocation5] sm:$0xff]
        %v175 = vadd.f32 %v173, %v174
        %vm176 = vcmask 261120
        %177 = vst.msk [vmem:[%s171] sm:$0xff] %vm176, %v175
        %s178 = sand.u32 %s75, 1
        %s179 = scalar_lea.sflag [#allocation4], %s178
        %s180 = sand.u32 %s75, 1
        %s181 = smul.addr %s180, 8
        %s182 = scalar_lea.vmem [#allocation7], %s181
        // Predicated region
        $region37: #{tpu_custom_call.1} parent=27 // pred_check
          %p183 = pneg %p85
        $region38: #{tpu_custom_call.1} parent=27 // pred_check_branch
          %185 = sbr.rel (%p183) target = $region40
        $region39: #{tpu_custom_call.1} parent=27 // pred_region
          %s187 = ssub.s32 128, 128
          %188 = vsyncadd %s179, %s187
          %s189 = smul.addr %s20, 128
          %s190 = scalar_lea.hbm %s2, %s189
          %s192 = sshll.u32 %s182, 4
          %s193 = int_to_ptr.vmem [resolvable:$true] %s192
          %195 = dma.vmem_to_hbm [thread:$0]  %s193, 128, %s190, %s179
        $region40: #{tpu_custom_call.1} parent=27 // pred_fallthru
          _
      $region28: #{tpu_custom_call.1} parent=5 // pred_fallthru
        _
      %p196 = scmp.le.s32.totalorder 2, %s15
      // Predicated region
      $region41: #{tpu_custom_call.1} parent=5 // pred_check
        %p197 = pneg %p196
      $region42: #{tpu_custom_call.1} parent=5 // pred_check_branch
        %199 = sbr.rel (%p197) target = $region44
      $region43: #{tpu_custom_call.1} parent=5 // pred_region
        %s200 = ssub.s32 %s15, 2
        // Predicated region
        $region45: #{tpu_custom_call.1} parent=43 // pred_check
          %p201 = pneg %p91
        $region46: #{tpu_custom_call.1} parent=43 // pred_check_branch
          %203 = sbr.rel (%p201) target = $region48
        $region47: #{tpu_custom_call.1} parent=43 // pred_region
          %s204 = sand.u32 %s76, 1
          %s205 = scalar_lea.sflag [#allocation4], %s204
          %s206 = sand.u32 %s76, 1
          %s207 = smul.addr %s206, 8
          %s208 = scalar_lea.vmem [#allocation7], %s207
          %209 = dma.done %s205, 128
        $region48: #{tpu_custom_call.1} parent=43 // pred_fallthru
          _
      $region44: #{tpu_custom_call.1} parent=5 // pred_fallthru
        _
    $region6: #{tpu_custom_call.1} parent=1 // loop_footer
      %s19 = sadd.s32 1, %s15
    $region7: #{tpu_custom_call.1} parent=1 // loop_footer_branch
      %14 = sbr.rel target = $region3
    $region8: #{tpu_custom_call.1} parent=1 // loop_exit
      _
    %210 = vsyncpa [#allocation3], 1
    %s211 = scalar_lea.sflag [#allocation3], 1
    %212 = vsyncpa %s211, 1
    %213 = vsyncpa [#allocation6], 1
    %214 = vsyncpa [#allocation4], 1
    %s215 = scalar_lea.sflag [#allocation4], 1
    %216 = vsyncpa %s215, 1

</llo_original>
